<compile_context>
chip_gen: v7x
topology: tpu7x:2x2x1
jax: 0.10.0
libtpu: 0.0.40
codegen_flags: <defaults>
</compile_context>

<pallas_src>
import jax
import jax.numpy as jnp
from jax.experimental import pallas as pl
from jax.experimental.pallas import tpu as pltpu

# ------------------------------------------------------------------
# Synthetic config (mirrors the fields the DQN network __init__ reads)
# ------------------------------------------------------------------
CONFIG = dict(
    obs_size=16,       # in_size
    act_size=4,        # out_size
    z_size=8,
    hidden_size=32,
    hidden_depth=2,
    mid_sz=16,
    mid_d=1,
    embed_size=8,
    concat_pos=(0, 1),
    embed_act="relu",
    no_embed=False,
)
BATCH = 128            # batched rows per call (MXU rows are free up to 128/256)
TB = 16                # batch tile per grid step
DTYPE = jnp.float32

LANES = 128
SUB = 8


def _pad_rows(k):
    return -(-k // SUB) * SUB


def _activation(v, name):
    if name == "relu":
        return jnp.maximum(v, 0.0)
    if name == "tanh":
        return jnp.tanh(v)
    return v


# ------------------------------------------------------------------
# Parameter construction (deterministic, PyTorch-Linear-style init)
# ------------------------------------------------------------------
def _init_linear(key, n_in, n_out):
    kw, kb = jax.random.split(key)
    bound = 1.0 / jnp.sqrt(jnp.asarray(n_in, DTYPE))
    w = jax.random.uniform(kw, (n_in, n_out), DTYPE, -bound, bound)
    b = jax.random.uniform(kb, (1, n_out), DTYPE, -bound, bound)
    return w, b


def build_params(config, key):
    """Raw per-layer params in the original (torch-like) structure."""
    in_size = config["obs_size"]
    out_size = config["act_size"]
    z_size = config["z_size"]
    hidden = config["hidden_size"]
    depth = config["hidden_depth"]
    mid_sz = config["mid_sz"]
    mid_d = config["mid_d"]
    concat_pos = tuple(config["concat_pos"])
    embed_size = z_size if config["no_embed"] else config["embed_size"]

    keys = iter(jax.random.split(key, 64))

    # Embedding nets: one LinearBlock per concat position.
    # TODO(synk): LinearBlock source not provided; assumed structure is
    #   Linear(z, mid_sz) -> act -> [Linear(mid_sz, mid_sz) -> act]*(mid_d-1)
    #   -> Linear(mid_sz, embed_size)   (no activation on the final layer).
    embed_params = []
    for _ in concat_pos:
        if config["no_embed"]:
            embed_params.append([])   # nn.Sequential() == identity
            continue
        layers = []
        dims = [z_size] + [mid_sz] * mid_d + [embed_size]
        for a, b in zip(dims[:-1], dims[1:]):
            layers.append(_init_linear(next(keys), a, b))
        embed_params.append(layers)

    # Primary layers.
    primary_params = []
    for i in range(depth + 1):
        n_in = in_size if i == 0 else hidden
        n_in += embed_size if i in concat_pos else 0
        n_out = out_size if i == depth else hidden
        primary_params.append(_init_linear(next(keys), n_in, n_out))

    return embed_params, primary_params


# ------------------------------------------------------------------
# Host-side packing: fuse embeds, split primaries, build 2 VMEM slabs
# ------------------------------------------------------------------
def pack_params(config, embed_params, primary_params):
    in_size = config["obs_size"]
    z_size = config["z_size"]
    hidden = config["hidden_size"]
    concat_pos = tuple(config["concat_pos"])
    embed_size = config["embed_size"]
    n_pos = len(concat_pos)
    S = in_size + z_size               # packed-state width
    E_w = n_pos * embed_size           # fused embedding width

    # TODO(synk): no_embed=True (identity embeddings) path not packed here.
    assert not config["no_embed"], "no_embed=True packing not implemented"

    # ---- 1) Fuse the per-position embedding nets into stacked / block-diag
    n_embed_layers = len(embed_params[0])
    fused_embed = []                   # (W, b, apply_act)
    for j in range(n_embed_layers):
        ws = [embed_params[p][j][0] for p in range(n_pos)]
        bs = [embed_params[p][j][1] for p in range(n_pos)]
        b_f = jnp.concatenate(bs, axis=-1)
        if j == 0:
            # Shared input z: horizontal stack, lifted to full state width
            # (zero rows over the x-part so the kernel feeds `state` directly).
            w_h = jnp.concatenate(ws, axis=-1)              # (z, n_pos*out0)
            w_f = jnp.zeros((S, w_h.shape[1]), DTYPE)
            w_f = w_f.at[in_size:in_size + z_size, :].set(w_h)
        else:
            k_j, o_j = ws[0].shape
            w_f = jnp.zeros((n_pos * k_j, n_pos * o_j), DTYPE)
            for p in range(n_pos):
                w_f = w_f.at[p * k_j:(p + 1) * k_j,
                             p * o_j:(p + 1) * o_j].set(ws[p])
        fused_embed.append((w_f, b_f, j < n_embed_layers - 1))

    # ---- 2) Split primary layers into x-part / (zero-padded) embed-part
    primary = []                       # (W_x, W_e_or_None, b, apply_relu)
    depth = config["hidden_depth"]
    for i, (w, b) in enumerate(primary_params):
        x_in = in_size if i == 0 else hidden
        if i in concat_pos:
            p = concat_pos.index(i)
            w_x = w[:x_in, :]
            w_e = jnp.zeros((E_w, w.shape[1]), DTYPE)
            w_e = w_e.at[p * embed_size:(p + 1) * embed_size, :].set(
                w[x_in:x_in + embed_size, :])
        else:
            w_x, w_e = w, None
        if i == 0:
            # Lift x-part to full state width (zero rows over the z-part).
            w_x_full = jnp.zeros((S, w_x.shape[1]), DTYPE)
            w_x_full = w_x_full.at[:in_size, :].set(w_x)
            w_x = w_x_full
        primary.append((w_x, w_e, b, i < depth))

    # ---- 3) Pack all weights into ONE (rows,128) slab, biases into (8,128)
    weights, w_meta = [], []           # w_meta: (row_offset, K, N)
    biases, b_meta = [], []            # b_meta: (row, N)
    off = 0

    def add_w(w):
        nonlocal off
        k, n = w.shape
        w_meta.append((off, k, n))
        weights.append(w)
        off += _pad_rows(k)
        return len(w_meta) - 1

    def add_b(b):
        n = b.shape[-1]
        b_meta.append((len(biases), n))
        biases.append(jnp.reshape(b, (-1,)))
        return len(b_meta) - 1

    embed_plan = tuple((add_w(w), add_b(b), act) for (w, b, act) in fused_embed)
    primary_plan = tuple(
        (add_w(w_x), (add_w(w_e) if w_e is not None else None), add_b(b), relu)
        for (w_x, w_e, b, relu) in primary)

    total_rows = max(off, SUB)
    wslab = jnp.zeros((total_rows, LANES), DTYPE)
    for w, (o, k, n) in zip(weights, w_meta):
        wslab = wslab.at[o:o + k, :n].set(w)

    bslab = jnp.zeros((_pad_rows(len(biases)), LANES), DTYPE)
    for i, b in enumerate(biases):
        bslab = bslab.at[i, :b.shape[0]].set(b)

    plan = dict(w_meta=tuple(w_meta), b_meta=tuple(b_meta),
                embed=embed_plan, primary=primary_plan,
                embed_act=config["embed_act"])
    return wslab, bslab, plan


# ------------------------------------------------------------------
# Fused Pallas kernel (whole forward per batch tile; params resident)
# ------------------------------------------------------------------
def _make_kernel(plan):
    w_meta, b_meta = plan["w_meta"], plan["b_meta"]
    embed_plan, primary_plan = plan["embed"], plan["primary"]
    embed_act = plan["embed_act"]

    def get_w(w_ref, i):
        o, k, n = w_meta[i]
        return w_ref[o:o + k, :n]          # static slice of the weight slab

    def get_b(b_ref, i):
        r, n = b_meta[i]
        return b_ref[r:r + 1, :n]          # (1, n) — broadcasts over rows

    def kernel(s_ref, w_ref, b_ref, o_ref):
        s = s_ref[...]                     # (tb, in_size + z_size)

        # Fused embedding nets: first layer consumes the packed state directly
        # (x rows are zero in the fused weight), later layers are block-diag.
        e = s
        for (wi, bi, act) in embed_plan:
            e = jnp.dot(e, get_w(w_ref, wi),
                        preferred_element_type=jnp.float32) + get_b(b_ref, bi)
            if act:
                e = _activation(e, embed_act)

        # Primary MLP: the concat([x, e]) is replaced by split x/e weights,
        # so every operand keeps its natural lane layout.
        h = s
        for (wxi, wei, bi, relu) in primary_plan:
            y = jnp.dot(h, get_w(w_ref, wxi), preferred_element_type=jnp.float32)
            if wei is not None:
                y = y + jnp.dot(e, get_w(w_ref, wei),
                                preferred_element_type=jnp.float32)
            y = y + get_b(b_ref, bi)
            h = jnp.maximum(y, 0.0) if relu else y

        o_ref[...] = h.astype(o_ref.dtype)

    return kernel


def embedding_dqn_forward(state, config, wslab, bslab, plan, *, tb=TB):
    """state: (B, in_size + z_size) — z packed at the end (z=None torch path)."""
    B, S = state.shape
    out_size = config["act_size"]
    assert B % tb == 0, "batch must be a multiple of the batch tile"

    kernel = _make_kernel(plan)
    return pl.pallas_call(
        kernel,
        out_shape=jax.ShapeDtypeStruct((B, out_size), state.dtype),
        grid=(B // tb,),
        in_specs=[
            pl.BlockSpec((tb, S), lambda i: (i, 0)),          # streamed state
            pl.BlockSpec(wslab.shape, lambda i: (0, 0)),      # resident weights
            pl.BlockSpec(bslab.shape, lambda i: (0, 0)),      # resident biases
        ],
        out_specs=pl.BlockSpec((tb, out_size), lambda i: (i, 0)),
        compiler_params=pltpu.CompilerParams(
            dimension_semantics=("parallel",)),               # megacore on v7x
    )(state, wslab, bslab)


# ------------------------------------------------------------------
# Pure-JAX reference (original unfused/unsplit math) for a sanity check
# ------------------------------------------------------------------
def reference_forward(state, config, embed_params, primary_params):
    in_size = config["obs_size"]
    z_size = config["z_size"]
    depth = config["hidden_depth"]
    concat_pos = tuple(config["concat_pos"])

    x = state[:, :in_size]
    z = state[:, in_size:in_size + z_size]
    for i in range(depth + 1):
        if i in concat_pos:
            layers = embed_params[concat_pos.index(i)]
            e = z
            for j, (w, b) in enumerate(layers):
                e = e @ w + b
                if j < len(layers) - 1:
                    e = _activation(e, config["embed_act"])
            x = jnp.concatenate([x, e], axis=-1)
        w, b = primary_params[i]
        x = x @ w + b
        if i < depth:
            x = jnp.maximum(x, 0.0)
    return x


if __name__ == "__main__":
    key = jax.random.PRNGKey(0)
    k_param, k_state = jax.random.split(key)

    embed_params, primary_params = build_params(CONFIG, k_param)
    wslab, bslab, plan = pack_params(CONFIG, embed_params, primary_params)

    # state includes z packed at the end (z=None branch of the torch forward).
    state = jax.random.normal(
        k_state, (BATCH, CONFIG["obs_size"] + CONFIG["z_size"]), DTYPE)

    out = embedding_dqn_forward(state, CONFIG, wslab, bslab, plan)
    out = jax.block_until_ready(out)

    ref = reference_forward(state, CONFIG, embed_params, primary_params)
    assert out.shape == (BATCH, CONFIG["act_size"])
    assert jnp.allclose(out, ref, atol=1e-4, rtol=1e-4), "mismatch vs reference"

    print("KERNEL_OK")
</pallas_src>

<mosaic_0001>
module attributes {stable_mosaic.version = 11 : i64} {
  func.func @kernel(%arg0: i32, %arg1: memref<16x24xf32, #tpu.memory_space<vmem>>, %arg2: memref<176x128xf32, #tpu.memory_space<vmem>>, %arg3: memref<8x128xf32, #tpu.memory_space<vmem>>, %arg4: memref<16x4xf32, #tpu.memory_space<vmem>>) attributes {dimension_semantics = [#tpu.dimension_semantics<parallel>], iteration_bounds = array<i64: 8>, scalar_prefetch = 0 : i64, scratch_operands = 0 : i64, tpu.core_type = #tpu.core_type<tc>, window_params = [{transform_indices = @transform_0, window_bounds = array<i64: 16, 24>}, {pipeline_mode = #tpu.pipeline_mode<synchronous>, transform_indices = @transform_1, window_bounds = array<i64: 176, 128>}, {pipeline_mode = #tpu.pipeline_mode<synchronous>, transform_indices = @transform_2, window_bounds = array<i64: 8, 128>}, {transform_indices = @transform_3, window_bounds = array<i64: 16, 4>}]} {
    %c0 = arith.constant 0 : index
    %c0_0 = arith.constant 0 : index
    %0 = vector.load %arg1[%c0, %c0_0] : memref<16x24xf32, #tpu.memory_space<vmem>>, vector<16x24xf32>
    %c0_1 = arith.constant 0 : index
    %c0_2 = arith.constant 0 : index
    %1 = vector.load %arg2[%c0_1, %c0_2] : memref<176x128xf32, #tpu.memory_space<vmem>>, vector<24x32xf32>
    %cst = arith.constant dense<0.000000e+00> : vector<16x32xf32>
    %2 = tpu.matmul %0, %1, %cst {dimension_numbers = #tpu.dot_dimension_numbers<[1], [0], [0], [1], [0, 0, 1, 1], [], []>} : vector<16x24xf32>, vector<24x32xf32>, vector<16x32xf32> -> vector<16x32xf32>
    %c0_3 = arith.constant 0 : index
    %c0_4 = arith.constant 0 : index
    %3 = vector.load %arg3[%c0_3, %c0_4] : memref<8x128xf32, #tpu.memory_space<vmem>>, vector<1x32xf32>
    %4 = vector.broadcast %3 : vector<1x32xf32> to vector<16x32xf32>
    %5 = arith.addf %2, %4 : vector<16x32xf32>
    %cst_5 = arith.constant 0.000000e+00 : f32
    %6 = vector.broadcast %cst_5 : f32 to vector<16x32xf32>
    %7 = arith.maximumf %5, %6 : vector<16x32xf32>
    %c24 = arith.constant 24 : index
    %c0_6 = arith.constant 0 : index
    %8 = vector.load %arg2[%c24, %c0_6] : memref<176x128xf32, #tpu.memory_space<vmem>>, vector<32x16xf32>
    %cst_7 = arith.constant dense<0.000000e+00> : vector<16x16xf32>
    %9 = tpu.matmul %7, %8, %cst_7 {dimension_numbers = #tpu.dot_dimension_numbers<[1], [0], [0], [1], [0, 0, 1, 1], [], []>} : vector<16x32xf32>, vector<32x16xf32>, vector<16x16xf32> -> vector<16x16xf32>
    %c1 = arith.constant 1 : index
    %c0_8 = arith.constant 0 : index
    %10 = vector.load %arg3[%c1, %c0_8] : memref<8x128xf32, #tpu.memory_space<vmem>>, vector<1x16xf32>
    %11 = vector.broadcast %10 : vector<1x16xf32> to vector<16x16xf32>
    %12 = arith.addf %9, %11 : vector<16x16xf32>
    %c56 = arith.constant 56 : index
    %c0_9 = arith.constant 0 : index
    %13 = vector.load %arg2[%c56, %c0_9] : memref<176x128xf32, #tpu.memory_space<vmem>>, vector<24x32xf32>
    %cst_10 = arith.constant dense<0.000000e+00> : vector<16x32xf32>
    %14 = tpu.matmul %0, %13, %cst_10 {dimension_numbers = #tpu.dot_dimension_numbers<[1], [0], [0], [1], [0, 0, 1, 1], [], []>} : vector<16x24xf32>, vector<24x32xf32>, vector<16x32xf32> -> vector<16x32xf32>
    %c80 = arith.constant 80 : index
    %c0_11 = arith.constant 0 : index
    %15 = vector.load %arg2[%c80, %c0_11] : memref<176x128xf32, #tpu.memory_space<vmem>>, vector<16x32xf32>
    %cst_12 = arith.constant dense<0.000000e+00> : vector<16x32xf32>
    %16 = tpu.matmul %12, %15, %cst_12 {dimension_numbers = #tpu.dot_dimension_numbers<[1], [0], [0], [1], [0, 0, 1, 1], [], []>} : vector<16x16xf32>, vector<16x32xf32>, vector<16x32xf32> -> vector<16x32xf32>
    %17 = arith.addf %14, %16 : vector<16x32xf32>
    %c2 = arith.constant 2 : index
    %c0_13 = arith.constant 0 : index
    %18 = vector.load %arg3[%c2, %c0_13] : memref<8x128xf32, #tpu.memory_space<vmem>>, vector<1x32xf32>
    %19 = vector.broadcast %18 : vector<1x32xf32> to vector<16x32xf32>
    %20 = arith.addf %17, %19 : vector<16x32xf32>
    %cst_14 = arith.constant 0.000000e+00 : f32
    %21 = vector.broadcast %cst_14 : f32 to vector<16x32xf32>
    %22 = arith.maximumf %20, %21 : vector<16x32xf32>
    %c96 = arith.constant 96 : index
    %c0_15 = arith.constant 0 : index
    %23 = vector.load %arg2[%c96, %c0_15] : memref<176x128xf32, #tpu.memory_space<vmem>>, vector<32x32xf32>
    %cst_16 = arith.constant dense<0.000000e+00> : vector<16x32xf32>
    %24 = tpu.matmul %22, %23, %cst_16 {dimension_numbers = #tpu.dot_dimension_numbers<[1], [0], [0], [1], [0, 0, 1, 1], [], []>} : vector<16x32xf32>, vector<32x32xf32>, vector<16x32xf32> -> vector<16x32xf32>
    %c128 = arith.constant 128 : index
    %c0_17 = arith.constant 0 : index
    %25 = vector.load %arg2[%c128, %c0_17] : memref<176x128xf32, #tpu.memory_space<vmem>>, vector<16x32xf32>
    %cst_18 = arith.constant dense<0.000000e+00> : vector<16x32xf32>
    %26 = tpu.matmul %12, %25, %cst_18 {dimension_numbers = #tpu.dot_dimension_numbers<[1], [0], [0], [1], [0, 0, 1, 1], [], []>} : vector<16x16xf32>, vector<16x32xf32>, vector<16x32xf32> -> vector<16x32xf32>
    %27 = arith.addf %24, %26 : vector<16x32xf32>
    %c3 = arith.constant 3 : index
    %c0_19 = arith.constant 0 : index
    %28 = vector.load %arg3[%c3, %c0_19] : memref<8x128xf32, #tpu.memory_space<vmem>>, vector<1x32xf32>
    %29 = vector.broadcast %28 : vector<1x32xf32> to vector<16x32xf32>
    %30 = arith.addf %27, %29 : vector<16x32xf32>
    %cst_20 = arith.constant 0.000000e+00 : f32
    %31 = vector.broadcast %cst_20 : f32 to vector<16x32xf32>
    %32 = arith.maximumf %30, %31 : vector<16x32xf32>
    %c144 = arith.constant 144 : index
    %c0_21 = arith.constant 0 : index
    %33 = vector.load %arg2[%c144, %c0_21] : memref<176x128xf32, #tpu.memory_space<vmem>>, vector<32x4xf32>
    %cst_22 = arith.constant dense<0.000000e+00> : vector<16x4xf32>
    %34 = tpu.matmul %32, %33, %cst_22 {dimension_numbers = #tpu.dot_dimension_numbers<[1], [0], [0], [1], [0, 0, 1, 1], [], []>} : vector<16x32xf32>, vector<32x4xf32>, vector<16x4xf32> -> vector<16x4xf32>
    %c4 = arith.constant 4 : index
    %c0_23 = arith.constant 0 : index
    %35 = vector.load %arg3[%c4, %c0_23] : memref<8x128xf32, #tpu.memory_space<vmem>>, vector<1x4xf32>
    %36 = vector.broadcast %35 : vector<1x4xf32> to vector<16x4xf32>
    %37 = arith.addf %34, %36 : vector<16x4xf32>
    %c0_24 = arith.constant 0 : index
    %c0_25 = arith.constant 0 : index
    %38 = vector.load %arg4[%c0_24, %c0_25] : memref<16x4xf32, #tpu.memory_space<vmem>>, vector<16x4xf32>
    tpu.vector_store %arg4[%c0_24, %c0_25], %37 {strides = array<i32>} : memref<16x4xf32, #tpu.memory_space<vmem>>, vector<16x4xf32>,
    return
  }
  func.func @transform_0(%arg0: i32) -> (i32, i32) {
    %c0_i32 = arith.constant 0 : i32
    %c0_i32_0 = arith.constant 0 : i32
    return %arg0, %c0_i32 : i32, i32
  }
  func.func @transform_1(%arg0: i32) -> (i32, i32) {
    %c0_i32 = arith.constant 0 : i32
    %c0_i32_0 = arith.constant 0 : i32
    %c0_i32_1 = arith.constant 0 : i32
    return %c0_i32, %c0_i32_0 : i32, i32
  }
  func.func @transform_2(%arg0: i32) -> (i32, i32) {
    %c0_i32 = arith.constant 0 : i32
    %c0_i32_0 = arith.constant 0 : i32
    %c0_i32_1 = arith.constant 0 : i32
    return %c0_i32, %c0_i32_0 : i32, i32
  }
  func.func @transform_3(%arg0: i32) -> (i32, i32) {
    %c0_i32 = arith.constant 0 : i32
    %c0_i32_0 = arith.constant 0 : i32
    return %arg0, %c0_i32 : i32, i32
  }
}

</mosaic_0001>

<llo_original>
// kernel: tpu_custom_call.1
$region0: #{tpu_custom_call.1}
  #allocation0 [shape = 'u32[]', space=smem, size = 0x4, offset = 0x4, fixed_abs, tag = 'smem constant byte address 0x4 - core index']
  #allocation1 [shape = 'u32[144,128]{1,0:T(1,128)}', space=vmem, size = 0x12000, scoped, tag = 'internal scratch']
  %s0 = inlined_call_operand.vmem [shape: f32[128,24], index: 0, kind: input, shape index: {}]
  %s1 = inlined_call_operand.hbm [shape: f32[176,128], index: 1, kind: input, shape index: {}]
  %s2 = inlined_call_operand.vmem [shape: f32[8,128], index: 2, kind: input, shape index: {}]
  %s3 = inlined_call_operand.vmem [shape: f32[128,4], index: 3, kind: output, shape index: {}]
  %s4 = sld [smem:[#allocation0]]
  $region49: #{tpu_custom_call.1} parent=0
    _
  %s6 = ssub.s32 1, %s4
  %s7 = scalar_select 0, %s6, %s4
  $region1: #{tpu_custom_call.1} parent=0
    #allocation2 [shape = 'u8[90112]{0}', space=vmem, size = 0x16000, scoped, tag = 'input window, operand 1, single buffered']
    #allocation3 [shape = 's32[2]{0}', space=sflag, size = 0x8, scoped, tag = 'scoped memory for tpu_custom_call.1']
    %8 = vsyncpa [#allocation3], 0
    loop: start=0, step=1, limit=10
    $region2: #{tpu_custom_call.1} parent=1 // loop_pre_header
      _
    $region3: #{tpu_custom_call.1} parent=1 // loop_header
      %s10 = sphi 0, %s14
      %p11 = scmp.ge.s32.totalorder %s10, 10
      %s20 = sphi 0, %s22
      %s23 = sphi 0, %s20
      %s24 = sphi 0, %s23
      %s40 = sphi 0, %s24
      %s44 = sphi 0, %s44
      %s46 = sphi 0, %s44
      %s47 = sphi 0, %s46
      %s61 = sphi 0, %s47
      %s65 = sphi 0, %s65
      %s67 = sphi 0, %s65
      %s68 = sphi 0, %s67
      %s82 = sphi 0, %s68
      %s88 = sphi 0, %s90
      %s91 = sphi 0, %s88
      %s92 = sphi 0, %s91
      %s108 = sphi 0, %s92
    $region4: #{tpu_custom_call.1} parent=1 // loop_header_branch
      %13 = sbr.rel (%p11) target = $region8
    $region5: #{tpu_custom_call.1} parent=1 // loop_body
      %s15 = ssub.s32 %s10, 1
      %s16 = ssub.s32 %s10, 2
      %s17 = sadd.s32 %s10, 1
      %s18 = ssub.s32 %s10, %s17
      %p19 = scmp.eq.s32.totalorder %s18, 0
      %s21 = sadd.s32 %s20, 1
      %s22 = scalar_select %p19, %s20, %s21
      %p25 = pneg %p19
      %p26 = scmp.eq.s32.totalorder %s10, 7
      %p27 = por %p25, %p26
      %p28 = scmp.ne.s32.totalorder %s20, %s23
      %p29 = scmp.eq.s32.totalorder %s10, 0
      %p30 = por %p28, %p29
      %p31 = scmp.ne.s32.totalorder %s20, %s23
      %p32 = scmp.eq.s32.totalorder %s15, 7
      %p33 = por %p31, %p32
      %p34 = scmp.ne.s32.totalorder %s23, %s24
      %p35 = scmp.eq.s32.totalorder %s15, 0
      %p36 = por %p34, %p35
      %p37 = scmp.ne.s32.totalorder %s23, %s24
      %p38 = scmp.eq.s32.totalorder %s16, 7
      %p39 = por %p37, %p38
      %p41 = scmp.ne.s32.totalorder %s24, %s40
      %p42 = scmp.eq.s32.totalorder %s16, 0
      %p43 = por %p41, %p42
      %s45 = sadd.s32 %s44, 1
      %p48 = scmp.eq.s32.totalorder %s10, 7
      %p49 = scmp.ne.s32.totalorder %s44, %s46
      %p50 = scmp.eq.s32.totalorder %s10, 0
      %p51 = por %p49, %p50
      %p52 = scmp.ne.s32.totalorder %s44, %s46
      %p53 = scmp.eq.s32.totalorder %s15, 7
      %p54 = por %p52, %p53
      %p55 = scmp.ne.s32.totalorder %s46, %s47
      %p56 = scmp.eq.s32.totalorder %s15, 0
      %p57 = por %p55, %p56
      %p58 = scmp.ne.s32.totalorder %s46, %s47
      %p59 = scmp.eq.s32.totalorder %s16, 7
      %p60 = por %p58, %p59
      %p62 = scmp.ne.s32.totalorder %s47, %s61
      %p63 = scmp.eq.s32.totalorder %s16, 0
      %p64 = por %p62, %p63
      %s66 = sadd.s32 %s65, 1
      %p69 = scmp.eq.s32.totalorder %s10, 7
      %p70 = scmp.ne.s32.totalorder %s65, %s67
      %p71 = scmp.eq.s32.totalorder %s10, 0
      %p72 = por %p70, %p71
      %p73 = scmp.ne.s32.totalorder %s65, %s67
      %p74 = scmp.eq.s32.totalorder %s15, 7
      %p75 = por %p73, %p74
      %p76 = scmp.ne.s32.totalorder %s67, %s68
      %p77 = scmp.eq.s32.totalorder %s15, 0
      %p78 = por %p76, %p77
      %p79 = scmp.ne.s32.totalorder %s67, %s68
      %p80 = scmp.eq.s32.totalorder %s16, 7
      %p81 = por %p79, %p80
      %p83 = scmp.ne.s32.totalorder %s68, %s82
      %p84 = scmp.eq.s32.totalorder %s16, 0
      %p85 = por %p83, %p84
      %s86 = ssub.s32 %s10, %s17
      %p87 = scmp.eq.s32.totalorder %s86, 0
      %s89 = sadd.s32 %s88, 1
      %s90 = scalar_select %p87, %s88, %s89
      %p93 = pneg %p87
      %p94 = scmp.eq.s32.totalorder %s10, 7
      %p95 = por %p93, %p94
      %p96 = scmp.ne.s32.totalorder %s88, %s91
      %p97 = scmp.eq.s32.totalorder %s10, 0
      %p98 = por %p96, %p97
      %p99 = scmp.ne.s32.totalorder %s88, %s91
      %p100 = scmp.eq.s32.totalorder %s15, 7
      %p101 = por %p99, %p100
      %p102 = scmp.ne.s32.totalorder %s91, %s92
      %p103 = scmp.eq.s32.totalorder %s15, 0
      %p104 = por %p102, %p103
      %p105 = scmp.ne.s32.totalorder %s91, %s92
      %p106 = scmp.eq.s32.totalorder %s16, 7
      %p107 = por %p105, %p106
      %p109 = scmp.ne.s32.totalorder %s92, %s108
      %p110 = scmp.eq.s32.totalorder %s16, 0
      %p111 = por %p109, %p110
      %p112 = scmp.le.s32.totalorder 1, %s10
      %p113 = scmp.lt.s32.totalorder %s10, 9
      %p114 = pnand %p112, %p113
      %p115 = pneg %p114
      // Predicated region
      $region9: #{tpu_custom_call.1} parent=5 // pred_check
        _
      $region10: #{tpu_custom_call.1} parent=5 // pred_check_branch
        %117 = sbr.rel (%p114) target = $region12
      $region11: #{tpu_custom_call.1} parent=5 // pred_region
        %s118 = ssub.s32 %s10, 1
        // Predicated region
        $region13: #{tpu_custom_call.1} parent=11 // pred_check
          %p119 = pneg %p57
        $region14: #{tpu_custom_call.1} parent=11 // pred_check_branch
          %121 = sbr.rel (%p119) target = $region16
        $region15: #{tpu_custom_call.1} parent=11 // pred_region
          %s123 = ssub.s32 2816, 2816
          %124 = vsyncadd [#allocation3], %s123
          %s125 = sshll.u32 [#allocation2], 4
          %s126 = int_to_ptr.vmem [resolvable:$true] %s125
          %131 = dma.hbm_to_vmem [thread:$0]  %s1, 2816, %s126, [#allocation3], 128, 128, 8
        $region16: #{tpu_custom_call.1} parent=11 // pred_fallthru
          _
        // Predicated region
        $region17: #{tpu_custom_call.1} parent=11 // pred_check
          %p132 = pneg %p78
        $region18: #{tpu_custom_call.1} parent=11 // pred_check_branch
          %134 = sbr.rel (%p132) target = $region20
        $region19: #{tpu_custom_call.1} parent=11 // pred_region
          _
        $region20: #{tpu_custom_call.1} parent=11 // pred_fallthru
          _
      $region12: #{tpu_custom_call.1} parent=5 // pred_fallthru
        _
      %p135 = scmp.lt.s32.totalorder %s10, 8
      // Predicated region
      $region21: #{tpu_custom_call.1} parent=5 // pred_check
        %p136 = pneg %p135
      $region22: #{tpu_custom_call.1} parent=5 // pred_check_branch
        %138 = sbr.rel (%p136) target = $region24
      $region23: #{tpu_custom_call.1} parent=5 // pred_region
        // Predicated region
        $region25: #{tpu_custom_call.1} parent=23 // pred_check
          %p139 = pneg %p30
        $region26: #{tpu_custom_call.1} parent=23 // pred_check_branch
          %141 = sbr.rel (%p139) target = $region28
        $region27: #{tpu_custom_call.1} parent=23 // pred_region
          %s142 = smul.u32 2, %s10
          %p143 = scmp.lt.s32.totalorder %s142, 15
          %s144 = scalar_select %p143, %s142, 15
          %s145 = smul.addr %s144, 8
          %s146 = scalar_lea.vmem %s0, %s145
          %s147 = smul.u32 2, %s10
        $region28: #{tpu_custom_call.1} parent=23 // pred_fallthru
          _
      $region24: #{tpu_custom_call.1} parent=5 // pred_fallthru
        _
      %p148 = scmp.le.s32.totalorder 1, %s10
      %p149 = scmp.lt.s32.totalorder %s10, 9
      %p150 = pnand %p148, %p149
      %p151 = pneg %p150
      // Predicated region
      $region29: #{tpu_custom_call.1} parent=5 // pred_check
        _
      $region30: #{tpu_custom_call.1} parent=5 // pred_check_branch
        %153 = sbr.rel (%p150) target = $region32
      $region31: #{tpu_custom_call.1} parent=5 // pred_region
        %s154 = ssub.s32 %s10, 1
        // Predicated region
        $region33: #{tpu_custom_call.1} parent=31 // pred_check
          %p155 = pneg %p57
        $region34: #{tpu_custom_call.1} parent=31 // pred_check_branch
          %157 = sbr.rel (%p155) target = $region36
        $region35: #{tpu_custom_call.1} parent=31 // pred_region
          %158 = dma.done [#allocation3], 2816
        $region36: #{tpu_custom_call.1} parent=31 // pred_fallthru
          _
        %s159 = smul.u32 2, %s15
        %p160 = scmp.lt.s32.totalorder %s159, 15
        %s161 = scalar_select %p160, %s159, 15
        %s162 = smul.addr %s161, 8
        %s163 = scalar_lea.vmem %s0, %s162
        %p164 = pneg %p36
        %p165 = pneg %p33
        %p166 = pneg %p57
        %p167 = pneg %p54
        %p168 = pneg %p78
        %p169 = pneg %p75
        %p170 = pneg %p104
        %p171 = pneg %p101
        %s172 = smul.u32 2, %s15
        %p173 = scmp.lt.s32.totalorder %s172, 15
        %s174 = scalar_select %p173, %s172, 15
        %s175 = smul.addr %s174, 8
        %s176 = scalar_lea.vmem %s3, %s175
        %s177 = smul.u32 2, %s15
        %p178 = scmp.lt.s32.totalorder %s177, 15
        %s179 = scalar_select %p178, %s177, 15
        %s180 = smul.addr %s179, 8
        %s181 = scalar_lea.vmem %s0, %s180
        %s182 = smul.u32 2, %s15
        %s183 = smul.u32 2, %s15
        %p184 = scmp.lt.s32.totalorder %s183, 15
        %s185 = scalar_select %p184, %s183, 15
        %s186 = smul.addr %s185, 8
        %s187 = scalar_lea.vmem %s3, %s186
        %s188 = smul.u32 2, %s15
        %v189 = vld [vmem:[%s181] sm:$0xff]
        %v190 = vld [vmem:[%s181 + $0x8] sm:$0xff]
        %v191 = vld [vmem:[#allocation2] sm:$0xff]
        %v192 = vld [vmem:[#allocation2 + $0x8] sm:$0xff]
        %v193 = vld [vmem:[#allocation2 + $0x10] sm:$0xff]
        %v194 = vld [vmem:[%s2] sm:$0x1]
        %v195 = vlaneseq
        %v196 = vshrl.u32 %v195, 7
        %v197 = vsub.s32 0, %v196
        %v198 = vrot.slane %v194, %v197
        %vm199 = vcmask 195584
        %v201 = vsel %vm199, %v189, 0
        %v204 = vsel %vm199, %v190, 0
        %206 = vmatprep.subr.mxu0 0.0
        %207 = vmatpush1.msra.mxu0 %v191
        %208 = vmatprep.subr.mxu0 0.0
        %209 = vmatpush1.msra.mxu0 %v192
        %210 = vmatprep.subr.mxu0 0.0
        %211 = vmatpush1.msra.mxu0 %v193
        %212 = vmatprep.subr.mxu0 0.0
        %213 = vmatpush1.msra.mxu0 0.0
        %214 = vmatprep.subr.mxu0 0.0
        %215 = vmatpush1.msra.mxu0 0.0
        %216 = vmatprep.subr.mxu0 0.0
        %217 = vmatpush1.msra.mxu0 0.0
        %218 = vmatprep.subr.mxu0 0.0
        %219 = vmatpush1.msra.mxu0 0.0
        %220 = vmatprep.subr.mxu0 0.0
        %221 = vmatpush1.msra.mxu0 0.0
        %222 = vmatprep.subr.mxu0 0.0
        %223 = vmatpush1.msra.mxu0 0.0
        %224 = vmatprep.subr.mxu0 0.0
        %225 = vmatpush1.msra.mxu0 0.0
        %226 = vmatprep.subr.mxu0 0.0
        %227 = vmatpush1.msra.mxu0 0.0
        %228 = vmatprep.subr.mxu0 0.0
        %229 = vmatpush1.msra.mxu0 0.0
        %230 = vmatprep.subr.mxu0 0.0
        %231 = vmatpush1.msra.mxu0 0.0
        %232 = vmatprep.subr.mxu0 0.0
        %233 = vmatpush1.msra.mxu0 0.0
        %234 = vmatprep.subr.mxu0 0.0
        %235 = vmatpush1.msra.mxu0 0.0
        %236 = vmatprep.subr.mxu0 0.0
        %237 = vmatpush1.msra.mxu0 0.0
        %238 = vmatprep.subr.mxu0 0.0
        %239 = vmatpush1.msra.mxu0 0.0
        %240 = vmatprep.subr.mxu0 0.0
        %241 = vmatpush1.msra.mxu0 0.0
        %242 = vmatprep.subr.mxu0 0.0
        %243 = vmatpush1.msra.mxu0 0.0
        %244 = vmatprep.subr.mxu0 0.0
        %245 = vmatpush1.msra.mxu0 0.0
        %246 = vmatprep.subr.mxu0 0.0
        %247 = vmatpush1.msra.mxu0 0.0
        %248 = vmatprep.subr.mxu0 0.0
        %249 = vmatpush1.msra.mxu0 0.0
        %250 = vmatprep.subr.mxu0 0.0
        %251 = vmatpush1.msra.mxu0 0.0
        %252 = vmatprep.subr.mxu0 0.0
        %253 = vmatpush1.msra.mxu0 0.0
        %254 = vmatprep.subr.mxu0 0.0
        %255 = vmatpush1.msra.mxu0 0.0
        %256 = vmatprep.subr.mxu0 0.0
        %257 = vmatpush1.msra.mxu0 0.0
        %258 = vmatprep.subr.mxu0 0.0
        %259 = vmatpush1.msra.mxu0 0.0
        %260 = vmatprep.subr.mxu0 0.0
        %261 = vmatpush1.msra.mxu0 0.0
        %262 = vmatprep.subr.mxu0 0.0
        %263 = vmatpush1.msra.mxu0 0.0
        %264 = vmatprep.subr.mxu0 0.0
        %265 = vmatpush1.msra.mxu0 0.0
        %266 = vmatprep.subr.mxu0 0.0
        %267 = vmatpush1.msra.mxu0 0.0
        %268 = vmatprep.subr.mxu0 0.0
        %269 = vmatpush1.msra.mxu0 0.0
        %270 = vmatprep.mubr.f32.mxu0 0.0
        %271 = vmatmul.mubr.f32.gmra.mrb[0].mxu0 %v201
        %v272 = vpop.f32.mrb[0].mxu0
        %v273 = vadd.f32 %v198, %v272
        %v274 = vpop.f32.mrb[0].mxu0
        %275 = vmatprep.mubr.f32.mxu0 0.0
        %276 = vmatmul.mubr.f32.gmra.mrb[0].mxu0 %v204
        %v277 = vpop.f32.mrb[0].mxu0
        %v278 = vadd.f32 %v198, %v277
        %v279 = vpop.f32.mrb[0].mxu0
        %280 = vdwg.mxu0
        %v281 = vmax.f32 %v273, 0.0
        %v282 = vmax.f32 %v278, 0.0
        %v283 = vld [vmem:[#allocation2 + $0x18] sm:$0xff]
        %v284 = vld [vmem:[#allocation2 + $0x20] sm:$0xff]
        %v285 = vld [vmem:[#allocation2 + $0x28] sm:$0xff]
        %v286 = vld [vmem:[#allocation2 + $0x30] sm:$0xff]
        %v287 = vld [vmem:[%s2 + $0x1] sm:$0x1]
        %v288 = vlaneseq
        %v289 = vshrl.u32 %v288, 7
        %v290 = vsub.s32 0, %v289
        %v291 = vrot.slane %v287, %v290
        %vm292 = vcmask 261120
        %v294 = vsel %vm292, %v281, 0
        %v297 = vsel %vm292, %v282, 0
        %299 = vmatprep.subr.mxu0 0.0
        %300 = vmatpush1.msra.mxu0 %v283
        %301 = vmatprep.subr.mxu0 0.0
        %302 = vmatpush1.msra.mxu0 %v284
        %303 = vmatprep.subr.mxu0 0.0
        %304 = vmatpush1.msra.mxu0 %v285
        %305 = vmatprep.subr.mxu0 0.0
        %306 = vmatpush1.msra.mxu0 %v286
        %307 = vmatprep.subr.mxu0 0.0
        %308 = vmatpush1.msra.mxu0 0.0
        %309 = vmatprep.subr.mxu0 0.0
        %310 = vmatpush1.msra.mxu0 0.0
        %311 = vmatprep.subr.mxu0 0.0
        %312 = vmatpush1.msra.mxu0 0.0
        %313 = vmatprep.subr.mxu0 0.0
        %314 = vmatpush1.msra.mxu0 0.0
        %315 = vmatprep.subr.mxu0 0.0
        %316 = vmatpush1.msra.mxu0 0.0
        %317 = vmatprep.subr.mxu0 0.0
        %318 = vmatpush1.msra.mxu0 0.0
        %319 = vmatprep.subr.mxu0 0.0
        %320 = vmatpush1.msra.mxu0 0.0
        %321 = vmatprep.subr.mxu0 0.0
        %322 = vmatpush1.msra.mxu0 0.0
        %323 = vmatprep.subr.mxu0 0.0
        %324 = vmatpush1.msra.mxu0 0.0
        %325 = vmatprep.subr.mxu0 0.0
        %326 = vmatpush1.msra.mxu0 0.0
        %327 = vmatprep.subr.mxu0 0.0
        %328 = vmatpush1.msra.mxu0 0.0
        %329 = vmatprep.subr.mxu0 0.0
        %330 = vmatpush1.msra.mxu0 0.0
        %331 = vmatprep.subr.mxu0 0.0
        %332 = vmatpush1.msra.mxu0 0.0
        %333 = vmatprep.subr.mxu0 0.0
        %334 = vmatpush1.msra.mxu0 0.0
        %335 = vmatprep.subr.mxu0 0.0
        %336 = vmatpush1.msra.mxu0 0.0
        %337 = vmatprep.subr.mxu0 0.0
        %338 = vmatpush1.msra.mxu0 0.0
        %339 = vmatprep.subr.mxu0 0.0
        %340 = vmatpush1.msra.mxu0 0.0
        %341 = vmatprep.subr.mxu0 0.0
        %342 = vmatpush1.msra.mxu0 0.0
        %343 = vmatprep.subr.mxu0 0.0
        %344 = vmatpush1.msra.mxu0 0.0
        %345 = vmatprep.subr.mxu0 0.0
        %346 = vmatpush1.msra.mxu0 0.0
        %347 = vmatprep.subr.mxu0 0.0
        %348 = vmatpush1.msra.mxu0 0.0
        %349 = vmatprep.subr.mxu0 0.0
        %350 = vmatpush1.msra.mxu0 0.0
        %351 = vmatprep.subr.mxu0 0.0
        %352 = vmatpush1.msra.mxu0 0.0
        %353 = vmatprep.subr.mxu0 0.0
        %354 = vmatpush1.msra.mxu0 0.0
        %355 = vmatprep.subr.mxu0 0.0
        %356 = vmatpush1.msra.mxu0 0.0
        %357 = vmatprep.subr.mxu0 0.0
        %358 = vmatpush1.msra.mxu0 0.0
        %359 = vmatprep.subr.mxu0 0.0
        %360 = vmatpush1.msra.mxu0 0.0
        %361 = vmatprep.subr.mxu0 0.0
        %362 = vmatpush1.msra.mxu0 0.0
        %363 = vmatprep.mubr.f32.mxu0 0.0
        %364 = vmatmul.mubr.f32.gmra.mrb[0].mxu0 %v294
        %v365 = vpop.f32.mrb[0].mxu0
        %v366 = vadd.f32 %v291, %v365
        %v367 = vpop.f32.mrb[0].mxu0
        %368 = vmatprep.mubr.f32.mxu0 0.0
        %369 = vmatmul.mubr.f32.gmra.mrb[0].mxu0 %v297
        %v370 = vpop.f32.mrb[0].mxu0
        %v371 = vadd.f32 %v291, %v370
        %v372 = vpop.f32.mrb[0].mxu0
        %373 = vdwg.mxu0
        %v374 = vld [vmem:[#allocation2 + $0x38] sm:$0xff]
        %v375 = vld [vmem:[#allocation2 + $0x40] sm:$0xff]
        %v376 = vld [vmem:[#allocation2 + $0x48] sm:$0xff]
        %v377 = vld [vmem:[#allocation2 + $0x50] sm:$0xff]
        %v378 = vld [vmem:[#allocation2 + $0x58] sm:$0xff]
        %vm379 = vcmask 130048
        %v381 = vsel %vm379, %v366, 0
        %v384 = vsel %vm379, %v371, 0
        %386 = vmatprep.subr.mxu0 0.0
        %387 = vmatpush1.msra.mxu0 %v377
        %388 = vmatprep.subr.mxu0 0.0
        %389 = vmatpush1.msra.mxu0 %v378
        %390 = vmatprep.subr.mxu0 0.0
        %391 = vmatpush1.msra.mxu0 0.0
        %392 = vmatprep.subr.mxu0 0.0
        %393 = vmatpush1.msra.mxu0 0.0
        %394 = vmatprep.subr.mxu0 0.0
        %395 = vmatpush1.msra.mxu0 0.0
        %396 = vmatprep.subr.mxu0 0.0
        %397 = vmatpush1.msra.mxu0 0.0
        %398 = vmatprep.subr.mxu0 0.0
        %399 = vmatpush1.msra.mxu0 0.0
        %400 = vmatprep.subr.mxu0 0.0
        %401 = vmatpush1.msra.mxu0 0.0
        %402 = vmatprep.subr.mxu0 0.0
        %403 = vmatpush1.msra.mxu0 0.0
        %404 = vmatprep.subr.mxu0 0.0
        %405 = vmatpush1.msra.mxu0 0.0
        %406 = vmatprep.subr.mxu0 0.0
        %407 = vmatpush1.msra.mxu0 0.0
        %408 = vmatprep.subr.mxu0 0.0
        %409 = vmatpush1.msra.mxu0 0.0
        %410 = vmatprep.subr.mxu0 0.0
        %411 = vmatpush1.msra.mxu0 0.0
        %412 = vmatprep.subr.mxu0 0.0
        %413 = vmatpush1.msra.mxu0 0.0
        %414 = vmatprep.subr.mxu0 0.0
        %415 = vmatpush1.msra.mxu0 0.0
        %416 = vmatprep.subr.mxu0 0.0
        %417 = vmatpush1.msra.mxu0 0.0
        %418 = vmatprep.subr.mxu0 0.0
        %419 = vmatpush1.msra.mxu0 0.0
        %420 = vmatprep.subr.mxu0 0.0
        %421 = vmatpush1.msra.mxu0 0.0
        %422 = vmatprep.subr.mxu0 0.0
        %423 = vmatpush1.msra.mxu0 0.0
        %424 = vmatprep.subr.mxu0 0.0
        %425 = vmatpush1.msra.mxu0 0.0
        %426 = vmatprep.subr.mxu0 0.0
        %427 = vmatpush1.msra.mxu0 0.0
        %428 = vmatprep.subr.mxu0 0.0
        %429 = vmatpush1.msra.mxu0 0.0
        %430 = vmatprep.subr.mxu0 0.0
        %431 = vmatpush1.msra.mxu0 0.0
        %432 = vmatprep.subr.mxu0 0.0
        %433 = vmatpush1.msra.mxu0 0.0
        %434 = vmatprep.subr.mxu0 0.0
        %435 = vmatpush1.msra.mxu0 0.0
        %436 = vmatprep.subr.mxu0 0.0
        %437 = vmatpush1.msra.mxu0 0.0
        %438 = vmatprep.subr.mxu0 0.0
        %439 = vmatpush1.msra.mxu0 0.0
        %440 = vmatprep.subr.mxu0 0.0
        %441 = vmatpush1.msra.mxu0 0.0
        %442 = vmatprep.subr.mxu0 0.0
        %443 = vmatpush1.msra.mxu0 0.0
        %444 = vmatprep.subr.mxu0 0.0
        %445 = vmatpush1.msra.mxu0 0.0
        %446 = vmatprep.subr.mxu0 0.0
        %447 = vmatpush1.msra.mxu0 0.0
        %448 = vmatprep.subr.mxu0 0.0
        %449 = vmatpush1.msra.mxu0 0.0
        %450 = vmatprep.mubr.f32.mxu0 0.0
        %451 = vmatmul.mubr.f32.gmra.mrb[0].mxu0 %v381
        %v452 = vpop.f32.mrb[0].mxu0
        %v453 = vadd.f32 0.0, %v452
        %v454 = vpop.f32.mrb[0].mxu0
        %455 = vmatprep.mubr.f32.mxu0 0.0
        %456 = vmatmul.mubr.f32.gmra.mrb[0].mxu0 %v384
        %v457 = vpop.f32.mrb[0].mxu0
        %v458 = vadd.f32 0.0, %v457
        %v459 = vpop.f32.mrb[0].mxu0
        %460 = vdwg.mxu0
        %461 = vmatprep.subr.mxu0 0.0
        %462 = vmatpush1.msra.mxu0 %v374
        %463 = vmatprep.subr.mxu0 0.0
        %464 = vmatpush1.msra.mxu0 %v375
        %465 = vmatprep.subr.mxu0 0.0
        %466 = vmatpush1.msra.mxu0 %v376
        %467 = vmatprep.subr.mxu0 0.0
        %468 = vmatpush1.msra.mxu0 0.0
        %469 = vmatprep.subr.mxu0 0.0
        %470 = vmatpush1.msra.mxu0 0.0
        %471 = vmatprep.subr.mxu0 0.0
        %472 = vmatpush1.msra.mxu0 0.0
        %473 = vmatprep.subr.mxu0 0.0
        %474 = vmatpush1.msra.mxu0 0.0
        %475 = vmatprep.subr.mxu0 0.0
        %476 = vmatpush1.msra.mxu0 0.0
        %477 = vmatprep.subr.mxu0 0.0
        %478 = vmatpush1.msra.mxu0 0.0
        %479 = vmatprep.subr.mxu0 0.0
        %480 = vmatpush1.msra.mxu0 0.0
        %481 = vmatprep.subr.mxu0 0.0
        %482 = vmatpush1.msra.mxu0 0.0
        %483 = vmatprep.subr.mxu0 0.0
        %484 = vmatpush1.msra.mxu0 0.0
        %485 = vmatprep.subr.mxu0 0.0
        %486 = vmatpush1.msra.mxu0 0.0
        %487 = vmatprep.subr.mxu0 0.0
        %488 = vmatpush1.msra.mxu0 0.0
        %489 = vmatprep.subr.mxu0 0.0
        %490 = vmatpush1.msra.mxu0 0.0
        %491 = vmatprep.subr.mxu0 0.0
        %492 = vmatpush1.msra.mxu0 0.0
        %493 = vmatprep.subr.mxu0 0.0
        %494 = vmatpush1.msra.mxu0 0.0
        %495 = vmatprep.subr.mxu0 0.0
        %496 = vmatpush1.msra.mxu0 0.0
        %497 = vmatprep.subr.mxu0 0.0
        %498 = vmatpush1.msra.mxu0 0.0
        %499 = vmatprep.subr.mxu0 0.0
        %500 = vmatpush1.msra.mxu0 0.0
        %501 = vmatprep.subr.mxu0 0.0
        %502 = vmatpush1.msra.mxu0 0.0
        %503 = vmatprep.subr.mxu0 0.0
        %504 = vmatpush1.msra.mxu0 0.0
        %505 = vmatprep.subr.mxu0 0.0
        %506 = vmatpush1.msra.mxu0 0.0
        %507 = vmatprep.subr.mxu0 0.0
        %508 = vmatpush1.msra.mxu0 0.0
        %509 = vmatprep.subr.mxu0 0.0
        %510 = vmatpush1.msra.mxu0 0.0
        %511 = vmatprep.subr.mxu0 0.0
        %512 = vmatpush1.msra.mxu0 0.0
        %513 = vmatprep.subr.mxu0 0.0
        %514 = vmatpush1.msra.mxu0 0.0
        %515 = vmatprep.subr.mxu0 0.0
        %516 = vmatpush1.msra.mxu0 0.0
        %517 = vmatprep.subr.mxu0 0.0
        %518 = vmatpush1.msra.mxu0 0.0
        %519 = vmatprep.subr.mxu0 0.0
        %520 = vmatpush1.msra.mxu0 0.0
        %521 = vmatprep.subr.mxu0 0.0
        %522 = vmatpush1.msra.mxu0 0.0
        %523 = vmatprep.subr.mxu0 0.0
        %524 = vmatpush1.msra.mxu0 0.0
        %525 = vmatprep.mubr.f32.mxu0 0.0
        %526 = vmatmul.mubr.f32.gmra.mrb[0].mxu0 %v201
        %v527 = vpop.f32.mrb[0].mxu0
        %v528 = vadd.f32 %v453, %v527
        %v529 = vpop.f32.mrb[0].mxu0
        %530 = vmatprep.mubr.f32.mxu0 0.0
        %531 = vmatmul.mubr.f32.gmra.mrb[0].mxu0 %v204
        %v532 = vpop.f32.mrb[0].mxu0
        %v533 = vadd.f32 %v458, %v532
        %v534 = vpop.f32.mrb[0].mxu0
        %535 = vdwg.mxu0
        %v536 = vld [vmem:[%s2 + $0x2] sm:$0x1]
        %v537 = vlaneseq
        %v538 = vshrl.u32 %v537, 7
        %v539 = vsub.s32 0, %v538
        %v540 = vrot.slane %v536, %v539
        %v541 = vadd.f32 %v528, %v540
        %v542 = vadd.f32 %v533, %v540
        %v543 = vmax.f32 %v541, 0.0
        %v544 = vmax.f32 %v542, 0.0
        %v545 = vld [vmem:[#allocation2 + $0x60] sm:$0xff]
        %v546 = vld [vmem:[#allocation2 + $0x68] sm:$0xff]
        %v547 = vld [vmem:[#allocation2 + $0x70] sm:$0xff]
        %v548 = vld [vmem:[#allocation2 + $0x78] sm:$0xff]
        %v549 = vld [vmem:[#allocation2 + $0x80] sm:$0xff]
        %v550 = vld [vmem:[#allocation2 + $0x88] sm:$0xff]
        %551 = vmatprep.subr.mxu0 0.0
        %552 = vmatpush1.msra.mxu0 %v549
        %553 = vmatprep.subr.mxu0 0.0
        %554 = vmatpush1.msra.mxu0 %v550
        %555 = vmatprep.subr.mxu0 0.0
        %556 = vmatpush1.msra.mxu0 0.0
        %557 = vmatprep.subr.mxu0 0.0
        %558 = vmatpush1.msra.mxu0 0.0
        %559 = vmatprep.subr.mxu0 0.0
        %560 = vmatpush1.msra.mxu0 0.0
        %561 = vmatprep.subr.mxu0 0.0
        %562 = vmatpush1.msra.mxu0 0.0
        %563 = vmatprep.subr.mxu0 0.0
        %564 = vmatpush1.msra.mxu0 0.0
        %565 = vmatprep.subr.mxu0 0.0
        %566 = vmatpush1.msra.mxu0 0.0
        %567 = vmatprep.subr.mxu0 0.0
        %568 = vmatpush1.msra.mxu0 0.0
        %569 = vmatprep.subr.mxu0 0.0
        %570 = vmatpush1.msra.mxu0 0.0
        %571 = vmatprep.subr.mxu0 0.0
        %572 = vmatpush1.msra.mxu0 0.0
        %573 = vmatprep.subr.mxu0 0.0
        %574 = vmatpush1.msra.mxu0 0.0
        %575 = vmatprep.subr.mxu0 0.0
        %576 = vmatpush1.msra.mxu0 0.0
        %577 = vmatprep.subr.mxu0 0.0
        %578 = vmatpush1.msra.mxu0 0.0
        %579 = vmatprep.subr.mxu0 0.0
        %580 = vmatpush1.msra.mxu0 0.0
        %581 = vmatprep.subr.mxu0 0.0
        %582 = vmatpush1.msra.mxu0 0.0
        %583 = vmatprep.subr.mxu0 0.0
        %584 = vmatpush1.msra.mxu0 0.0
        %585 = vmatprep.subr.mxu0 0.0
        %586 = vmatpush1.msra.mxu0 0.0
        %587 = vmatprep.subr.mxu0 0.0
        %588 = vmatpush1.msra.mxu0 0.0
        %589 = vmatprep.subr.mxu0 0.0
        %590 = vmatpush1.msra.mxu0 0.0
        %591 = vmatprep.subr.mxu0 0.0
        %592 = vmatpush1.msra.mxu0 0.0
        %593 = vmatprep.subr.mxu0 0.0
        %594 = vmatpush1.msra.mxu0 0.0
        %595 = vmatprep.subr.mxu0 0.0
        %596 = vmatpush1.msra.mxu0 0.0
        %597 = vmatprep.subr.mxu0 0.0
        %598 = vmatpush1.msra.mxu0 0.0
        %599 = vmatprep.subr.mxu0 0.0
        %600 = vmatpush1.msra.mxu0 0.0
        %601 = vmatprep.subr.mxu0 0.0
        %602 = vmatpush1.msra.mxu0 0.0
        %603 = vmatprep.subr.mxu0 0.0
        %604 = vmatpush1.msra.mxu0 0.0
        %605 = vmatprep.subr.mxu0 0.0
        %606 = vmatpush1.msra.mxu0 0.0
        %607 = vmatprep.subr.mxu0 0.0
        %608 = vmatpush1.msra.mxu0 0.0
        %609 = vmatprep.subr.mxu0 0.0
        %610 = vmatpush1.msra.mxu0 0.0
        %611 = vmatprep.subr.mxu0 0.0
        %612 = vmatpush1.msra.mxu0 0.0
        %613 = vmatprep.subr.mxu0 0.0
        %614 = vmatpush1.msra.mxu0 0.0
        %615 = vmatprep.mubr.f32.mxu0 0.0
        %616 = vmatmul.mubr.f32.gmra.mrb[0].mxu0 %v381
        %v617 = vpop.f32.mrb[0].mxu0
        %v618 = vadd.f32 0.0, %v617
        %v619 = vpop.f32.mrb[0].mxu0
        %620 = vmatprep.mubr.f32.mxu0 0.0
        %621 = vmatmul.mubr.f32.gmra.mrb[0].mxu0 %v384
        %v622 = vpop.f32.mrb[0].mxu0
        %v623 = vadd.f32 0.0, %v622
        %v624 = vpop.f32.mrb[0].mxu0
        %625 = vdwg.mxu0
        %v627 = vsel %vm292, %v543, 0
        %v630 = vsel %vm292, %v544, 0
        %632 = vmatprep.subr.mxu0 0.0
        %633 = vmatpush1.msra.mxu0 %v545
        %634 = vmatprep.subr.mxu0 0.0
        %635 = vmatpush1.msra.mxu0 %v546
        %636 = vmatprep.subr.mxu0 0.0
        %637 = vmatpush1.msra.mxu0 %v547
        %638 = vmatprep.subr.mxu0 0.0
        %639 = vmatpush1.msra.mxu0 %v548
        %640 = vmatprep.subr.mxu0 0.0
        %641 = vmatpush1.msra.mxu0 0.0
        %642 = vmatprep.subr.mxu0 0.0
        %643 = vmatpush1.msra.mxu0 0.0
        %644 = vmatprep.subr.mxu0 0.0
        %645 = vmatpush1.msra.mxu0 0.0
        %646 = vmatprep.subr.mxu0 0.0
        %647 = vmatpush1.msra.mxu0 0.0
        %648 = vmatprep.subr.mxu0 0.0
        %649 = vmatpush1.msra.mxu0 0.0
        %650 = vmatprep.subr.mxu0 0.0
        %651 = vmatpush1.msra.mxu0 0.0
        %652 = vmatprep.subr.mxu0 0.0
        %653 = vmatpush1.msra.mxu0 0.0
        %654 = vmatprep.subr.mxu0 0.0
        %655 = vmatpush1.msra.mxu0 0.0
        %656 = vmatprep.subr.mxu0 0.0
        %657 = vmatpush1.msra.mxu0 0.0
        %658 = vmatprep.subr.mxu0 0.0
        %659 = vmatpush1.msra.mxu0 0.0
        %660 = vmatprep.subr.mxu0 0.0
        %661 = vmatpush1.msra.mxu0 0.0
        %662 = vmatprep.subr.mxu0 0.0
        %663 = vmatpush1.msra.mxu0 0.0
        %664 = vmatprep.subr.mxu0 0.0
        %665 = vmatpush1.msra.mxu0 0.0
        %666 = vmatprep.subr.mxu0 0.0
        %667 = vmatpush1.msra.mxu0 0.0
        %668 = vmatprep.subr.mxu0 0.0
        %669 = vmatpush1.msra.mxu0 0.0
        %670 = vmatprep.subr.mxu0 0.0
        %671 = vmatpush1.msra.mxu0 0.0
        %672 = vmatprep.subr.mxu0 0.0
        %673 = vmatpush1.msra.mxu0 0.0
        %674 = vmatprep.subr.mxu0 0.0
        %675 = vmatpush1.msra.mxu0 0.0
        %676 = vmatprep.subr.mxu0 0.0
        %677 = vmatpush1.msra.mxu0 0.0
        %678 = vmatprep.subr.mxu0 0.0
        %679 = vmatpush1.msra.mxu0 0.0
        %680 = vmatprep.subr.mxu0 0.0
        %681 = vmatpush1.msra.mxu0 0.0
        %682 = vmatprep.subr.mxu0 0.0
        %683 = vmatpush1.msra.mxu0 0.0
        %684 = vmatprep.subr.mxu0 0.0
        %685 = vmatpush1.msra.mxu0 0.0
        %686 = vmatprep.subr.mxu0 0.0
        %687 = vmatpush1.msra.mxu0 0.0
        %688 = vmatprep.subr.mxu0 0.0
        %689 = vmatpush1.msra.mxu0 0.0
        %690 = vmatprep.subr.mxu0 0.0
        %691 = vmatpush1.msra.mxu0 0.0
        %692 = vmatprep.subr.mxu0 0.0
        %693 = vmatpush1.msra.mxu0 0.0
        %694 = vmatprep.subr.mxu0 0.0
        %695 = vmatpush1.msra.mxu0 0.0
        %696 = vmatprep.mubr.f32.mxu0 0.0
        %697 = vmatmul.mubr.f32.gmra.mrb[0].mxu0 %v627
        %v698 = vpop.f32.mrb[0].mxu0
        %v699 = vadd.f32 %v618, %v698
        %v700 = vpop.f32.mrb[0].mxu0
        %701 = vmatprep.mubr.f32.mxu0 0.0
        %702 = vmatmul.mubr.f32.gmra.mrb[0].mxu0 %v630
        %v703 = vpop.f32.mrb[0].mxu0
        %v704 = vadd.f32 %v623, %v703
        %v705 = vpop.f32.mrb[0].mxu0
        %706 = vdwg.mxu0
        %v707 = vld [vmem:[%s2 + $0x3] sm:$0x1]
        %v708 = vlaneseq
        %v709 = vshrl.u32 %v708, 7
        %v710 = vsub.s32 0, %v709
        %v711 = vrot.slane %v707, %v710
        %v712 = vadd.f32 %v699, %v711
        %v713 = vadd.f32 %v704, %v711
        %v714 = vmax.f32 %v712, 0.0
        %v715 = vmax.f32 %v713, 0.0
        %v716 = vld [vmem:[#allocation2 + $0x90] sm:$0xff]
        %v717 = vld [vmem:[#allocation2 + $0x98] sm:$0xff]
        %v718 = vld [vmem:[#allocation2 + $0xa0] sm:$0xff]
        %v719 = vld [vmem:[#allocation2 + $0xa8] sm:$0xff]
        %v720 = vld [vmem:[%s2 + $0x4] sm:$0x1]
        %v721 = vlaneseq
        %v722 = vshrl.u32 %v721, 7
        %v723 = vsub.s32 0, %v722
        %v724 = vrot.slane %v720, %v723
        %v726 = vsel %vm292, %v714, 0
        %v729 = vsel %vm292, %v715, 0
        %731 = vmatprep.subr.mxu0 0.0
        %732 = vmatpush1.msra.mxu0 %v716
        %733 = vmatprep.subr.mxu0 0.0
        %734 = vmatpush1.msra.mxu0 %v717
        %735 = vmatprep.subr.mxu0 0.0
        %736 = vmatpush1.msra.mxu0 %v718
        %737 = vmatprep.subr.mxu0 0.0
        %738 = vmatpush1.msra.mxu0 %v719
        %739 = vmatprep.subr.mxu0 0.0
        %740 = vmatpush1.msra.mxu0 0.0
        %741 = vmatprep.subr.mxu0 0.0
        %742 = vmatpush1.msra.mxu0 0.0
        %743 = vmatprep.subr.mxu0 0.0
        %744 = vmatpush1.msra.mxu0 0.0
        %745 = vmatprep.subr.mxu0 0.0
        %746 = vmatpush1.msra.mxu0 0.0
        %747 = vmatprep.subr.mxu0 0.0
        %748 = vmatpush1.msra.mxu0 0.0
        %749 = vmatprep.subr.mxu0 0.0
        %750 = vmatpush1.msra.mxu0 0.0
        %751 = vmatprep.subr.mxu0 0.0
        %752 = vmatpush1.msra.mxu0 0.0
        %753 = vmatprep.subr.mxu0 0.0
        %754 = vmatpush1.msra.mxu0 0.0
        %755 = vmatprep.subr.mxu0 0.0
        %756 = vmatpush1.msra.mxu0 0.0
        %757 = vmatprep.subr.mxu0 0.0
        %758 = vmatpush1.msra.mxu0 0.0
        %759 = vmatprep.subr.mxu0 0.0
        %760 = vmatpush1.msra.mxu0 0.0
        %761 = vmatprep.subr.mxu0 0.0
        %762 = vmatpush1.msra.mxu0 0.0
        %763 = vmatprep.subr.mxu0 0.0
        %764 = vmatpush1.msra.mxu0 0.0
        %765 = vmatprep.subr.mxu0 0.0
        %766 = vmatpush1.msra.mxu0 0.0
        %767 = vmatprep.subr.mxu0 0.0
        %768 = vmatpush1.msra.mxu0 0.0
        %769 = vmatprep.subr.mxu0 0.0
        %770 = vmatpush1.msra.mxu0 0.0
        %771 = vmatprep.subr.mxu0 0.0
        %772 = vmatpush1.msra.mxu0 0.0
        %773 = vmatprep.subr.mxu0 0.0
        %774 = vmatpush1.msra.mxu0 0.0
        %775 = vmatprep.subr.mxu0 0.0
        %776 = vmatpush1.msra.mxu0 0.0
        %777 = vmatprep.subr.mxu0 0.0
        %778 = vmatpush1.msra.mxu0 0.0
        %779 = vmatprep.subr.mxu0 0.0
        %780 = vmatpush1.msra.mxu0 0.0
        %781 = vmatprep.subr.mxu0 0.0
        %782 = vmatpush1.msra.mxu0 0.0
        %783 = vmatprep.subr.mxu0 0.0
        %784 = vmatpush1.msra.mxu0 0.0
        %785 = vmatprep.subr.mxu0 0.0
        %786 = vmatpush1.msra.mxu0 0.0
        %787 = vmatprep.subr.mxu0 0.0
        %788 = vmatpush1.msra.mxu0 0.0
        %789 = vmatprep.subr.mxu0 0.0
        %790 = vmatpush1.msra.mxu0 0.0
        %791 = vmatprep.subr.mxu0 0.0
        %792 = vmatpush1.msra.mxu0 0.0
        %793 = vmatprep.subr.mxu0 0.0
        %794 = vmatpush1.msra.mxu0 0.0
        %795 = vmatprep.mubr.f32.mxu0 0.0
        %796 = vmatmul.mubr.f32.gmra.mrb[0].mxu0 %v726
        %v797 = vpop.f32.mrb[0].mxu0
        %v798 = vadd.f32 %v724, %v797
        %v799 = vpop.f32.mrb[0].mxu0
        %800 = vmatprep.mubr.f32.mxu0 0.0
        %801 = vmatmul.mubr.f32.gmra.mrb[0].mxu0 %v729
        %v802 = vpop.f32.mrb[0].mxu0
        %v803 = vadd.f32 %v724, %v802
        %v804 = vpop.f32.mrb[0].mxu0
        %805 = vdwg.mxu0
        %vm806 = vcmask 31744
        %807 = vst.msk [vmem:[%s187] sm:$0xff] %vm806, %v798
        %808 = vst.msk [vmem:[%s187 + $0x8] sm:$0xff] %vm806, %v803
        %s809 = smul.u32 2, %s15
        %p810 = scmp.lt.s32.totalorder %s809, 15
        %s811 = scalar_select %p810, %s809, 15
        %s812 = smul.addr %s811, 8
        %s813 = scalar_lea.vmem %s3, %s812
        // Predicated region
        $region37: #{tpu_custom_call.1} parent=31 // pred_check
          %p814 = pneg %p101
        $region38: #{tpu_custom_call.1} parent=31 // pred_check_branch
          %816 = sbr.rel (%p814) target = $region40
        $region39: #{tpu_custom_call.1} parent=31 // pred_region
          %s817 = smul.u32 2, %s15
        $region40: #{tpu_custom_call.1} parent=31 // pred_fallthru
          _
      $region32: #{tpu_custom_call.1} parent=5 // pred_fallthru
        _
      %p818 = scmp.le.s32.totalorder 2, %s10
      // Predicated region
      $region41: #{tpu_custom_call.1} parent=5 // pred_check
        %p819 = pneg %p818
      $region42: #{tpu_custom_call.1} parent=5 // pred_check_branch
        %821 = sbr.rel (%p819) target = $region44
      $region43: #{tpu_custom_call.1} parent=5 // pred_region
        %s822 = ssub.s32 %s10, 2
        // Predicated region
        $region45: #{tpu_custom_call.1} parent=43 // pred_check
          %p823 = pneg %p107
        $region46: #{tpu_custom_call.1} parent=43 // pred_check_branch
          %825 = sbr.rel (%p823) target = $region48
        $region47: #{tpu_custom_call.1} parent=43 // pred_region
          %s826 = smul.u32 2, %s16
          %p827 = scmp.lt.s32.totalorder %s826, 15
          %s828 = scalar_select %p827, %s826, 15
          %s829 = smul.addr %s828, 8
          %s830 = scalar_lea.vmem %s3, %s829
        $region48: #{tpu_custom_call.1} parent=43 // pred_fallthru
          _
      $region44: #{tpu_custom_call.1} parent=5 // pred_fallthru
        _
    $region6: #{tpu_custom_call.1} parent=1 // loop_footer
      %s14 = sadd.s32 1, %s10
    $region7: #{tpu_custom_call.1} parent=1 // loop_footer_branch
      %9 = sbr.rel target = $region3
    $region8: #{tpu_custom_call.1} parent=1 // loop_exit
      _
    %831 = vsyncpa [#allocation3], 1
    %s832 = scalar_lea.sflag [#allocation3], 1
    %833 = vsyncpa %s832, 1

</llo_original>
